<compile_context>
chip_gen: v7x
topology: tpu7x:2x2x1
jax: 0.10.0
libtpu: 0.0.40
codegen_flags: <defaults>
</compile_context>

<pallas_src>
import jax
import jax.numpy as jnp
from jax.experimental import pallas as pl
from jax.experimental.pallas import tpu as pltpu

LANE = 128


def _round_up(n, m):
    return ((n + m - 1) // m) * m


def _pad2d(a, rows, cols):
    if a.shape == (rows, cols):
        return a
    out = jnp.zeros((rows, cols), a.dtype)
    return out.at[: a.shape[0], : a.shape[1]].set(a)


def _mlp_kernel(x_ref,
                w_in_ref, b_in_ref,
                w_h1_ref, b_h1_ref,
                w_h2_ref, b_h2_ref,
                w_h3_ref, b_h3_ref,
                w_out_ref, b_out_ref,
                o_ref):
    """Fused forward for one batch tile: 4x (Linear + ReLU) + final Linear.

    bf16 x bf16 -> f32 MXU matmuls; f32 biases added post-matmul; activations
    re-cast to bf16 between layers. x arrives f32 / lane-unpadded and is cast
    here; the final store is a narrow (TB, out_size) f32 block.
    """

    def dense(h, w_ref, b_ref):
        return jnp.dot(h, w_ref[...], preferred_element_type=jnp.float32) + b_ref[...]

    h = x_ref[...].astype(jnp.bfloat16)                                       # (TB, F)
    h = jnp.maximum(dense(h, w_in_ref, b_in_ref), 0.0).astype(jnp.bfloat16)   # layer_in  + relu
    h = jnp.maximum(dense(h, w_h1_ref, b_h1_ref), 0.0).astype(jnp.bfloat16)   # hidden1   + relu
    h = jnp.maximum(dense(h, w_h2_ref, b_h2_ref), 0.0).astype(jnp.bfloat16)   # hidden2   + relu
    h = jnp.maximum(dense(h, w_h3_ref, b_h3_ref), 0.0).astype(jnp.bfloat16)   # hidden3   + relu
    o_ref[...] = dense(h, w_out_ref, b_out_ref).astype(o_ref.dtype)           # layer_output


def red_arquitectura_c_forward(x, params, *, tile_b=2048):
    """x: (B, input_size) f32. params: dict of (in,out) weights + (1,out) biases."""
    B, F = x.shape
    out_size = params["w_out"].shape[1]

    # Batch tile: multiple of 16 (bf16 sublane pack). Large default amortises
    # the ~0.35 us per-grid-step overhead; VMEM use stays at a few MiB.
    B16 = _round_up(B, 16)
    TB = min(_round_up(tile_b, 16), B16)
    # v7x megacore: ensure the ("parallel",) batch axis has >= 2 grid steps so
    # both TensorCores get work (the resident weights are tiny, so duplicating
    # them per core is free).
    if B16 >= 32:
        TB = min(TB, _round_up((B16 + 1) // 2, 16))
    B_pad = _round_up(B, TB)

    # Padded hidden widths (128-lane). Zero padding is exact.
    p100 = _round_up(100, LANE)
    p50 = _round_up(50, LANE)
    pF = _round_up(F, LANE)

    layer_dims = {
        "in": (F, p100),        # x stays lane-unpadded -> first matmul has K = F
        "h1": (p100, p50),
        "h2": (p50, p100),      # TODO(synk): original declared nn.Linear(24,100) (shape bug)
        "h3": (p100, pF),
        "out": (pF, out_size),  # narrow out dim -> small f32 writeback
    }

    # Row-pad x only when needed; no lane padding, no dtype change in HBM.
    x_in = x if B_pad == B else _pad2d(x, B_pad, F)

    operands = [x_in]
    in_specs = [pl.BlockSpec((TB, F), lambda i: (i, 0))]      # streamed per tile
    param_bytes = 0
    for name in ("in", "h1", "h2", "h3", "out"):
        rin, rout = layer_dims[name]
        w = _pad2d(params[f"w_{name}"].astype(jnp.bfloat16), rin, rout)
        b = _pad2d(params[f"b_{name}"].astype(jnp.float32), 1, rout)
        operands += [w, b]
        # Constant index_map -> weights/biases stay resident in VMEM.
        in_specs.append(pl.BlockSpec(w.shape, lambda i: (0, 0)))
        in_specs.append(pl.BlockSpec(b.shape, lambda i: (0, 0)))
        param_bytes += w.size * 2 + b.size * 4

    grid = (B_pad // TB,)

    flops = 2 * B_pad * (F * p100 + p100 * p50 + p50 * p100 + p100 * pF + pF * out_size)
    bytes_accessed = B_pad * F * 4 + B_pad * out_size * 4 + param_bytes

    out = pl.pallas_call(
        _mlp_kernel,
        out_shape=jax.ShapeDtypeStruct((B_pad, out_size), jnp.float32),
        grid=grid,
        in_specs=in_specs,
        out_specs=pl.BlockSpec((TB, out_size), lambda i: (i, 0)),
        compiler_params=pltpu.CompilerParams(
            dimension_semantics=("parallel",),
            vmem_limit_bytes=32 * 1024 * 1024),
        cost_estimate=pl.CostEstimate(flops=flops, transcendentals=0,
                                      bytes_accessed=bytes_accessed),
    )(*operands)

    # Drop batch padding rows (no column slice needed: output is already narrow).
    return out if B_pad == B else out[:B]


def init_params(key, input_size, output_size):
    """Deterministic init mirroring nn.Linear's U(-1/sqrt(fan_in), 1/sqrt(fan_in)).

    Weights stored as (in_features, out_features); biases as (1, out_features).
    """
    dims = [
        ("in", input_size, 100),
        ("h1", 100, 50),
        ("h2", 50, 100),   # TODO(synk): original declared in_features=24 (shape bug)
        ("h3", 100, input_size),
        ("out", input_size, output_size),
    ]
    params = {}
    for name, fan_in, fan_out in dims:
        key, kw, kb = jax.random.split(key, 3)
        bound = 1.0 / jnp.sqrt(jnp.float32(fan_in))
        params[f"w_{name}"] = jax.random.uniform(
            kw, (fan_in, fan_out), jnp.float32, -bound, bound)
        params[f"b_{name}"] = jax.random.uniform(
            kb, (1, fan_out), jnp.float32, -bound, bound)
    return params


def _reference_forward(x, params):
    """Pure-JAX reference using the same bf16-operand / f32-accumulate path."""
    h = x.astype(jnp.bfloat16)
    for name in ("in", "h1", "h2", "h3"):
        w = params[f"w_{name}"].astype(jnp.bfloat16)
        a = jnp.dot(h, w, preferred_element_type=jnp.float32) + params[f"b_{name}"]
        h = jnp.maximum(a, 0.0).astype(jnp.bfloat16)
    w = params["w_out"].astype(jnp.bfloat16)
    return jnp.dot(h, w, preferred_element_type=jnp.float32) + params["b_out"]


if __name__ == "__main__":
    key = jax.random.PRNGKey(0)
    k_params, k_x = jax.random.split(key)

    input_size = 24   # matches the 24 appearing in the module definition
    output_size = 4
    batch = 8

    params = init_params(k_params, input_size, output_size)
    x = jax.random.normal(k_x, (batch, input_size), jnp.float32)

    fwd = jax.jit(red_arquitectura_c_forward)
    out = jax.block_until_ready(fwd(x, params))

    ref = _reference_forward(x, params)
    assert out.shape == (batch, output_size)
    assert jnp.allclose(out, ref, atol=1e-2, rtol=1e-2)

    print("KERNEL_OK")
</pallas_src>

<mosaic_0001>
module attributes {stable_mosaic.version = 11 : i64} {
  func.func @_mlp_kernel(%arg0: i32, %arg1: memref<16x24xf32, #tpu.memory_space<vmem>>, %arg2: memref<24x128xbf16, #tpu.memory_space<vmem>>, %arg3: memref<1x128xf32, #tpu.memory_space<vmem>>, %arg4: memref<128x128xbf16, #tpu.memory_space<vmem>>, %arg5: memref<1x128xf32, #tpu.memory_space<vmem>>, %arg6: memref<128x128xbf16, #tpu.memory_space<vmem>>, %arg7: memref<1x128xf32, #tpu.memory_space<vmem>>, %arg8: memref<128x128xbf16, #tpu.memory_space<vmem>>, %arg9: memref<1x128xf32, #tpu.memory_space<vmem>>, %arg10: memref<128x4xbf16, #tpu.memory_space<vmem>>, %arg11: memref<1x4xf32, #tpu.memory_space<vmem>>, %arg12: memref<16x4xf32, #tpu.memory_space<vmem>>) attributes {dimension_semantics = [#tpu.dimension_semantics<parallel>], iteration_bounds = array<i64: 1>, scalar_prefetch = 0 : i64, scratch_operands = 0 : i64, tpu.core_type = #tpu.core_type<tc>, window_params = [{transform_indices = @transform_0, window_bounds = array<i64: 16, 24>}, {pipeline_mode = #tpu.pipeline_mode<synchronous>, transform_indices = @transform_1, window_bounds = array<i64: 24, 128>}, {pipeline_mode = #tpu.pipeline_mode<synchronous>, transform_indices = @transform_2, window_bounds = array<i64: 1, 128>}, {pipeline_mode = #tpu.pipeline_mode<synchronous>, transform_indices = @transform_3, window_bounds = array<i64: 128, 128>}, {pipeline_mode = #tpu.pipeline_mode<synchronous>, transform_indices = @transform_4, window_bounds = array<i64: 1, 128>}, {pipeline_mode = #tpu.pipeline_mode<synchronous>, transform_indices = @transform_5, window_bounds = array<i64: 128, 128>}, {pipeline_mode = #tpu.pipeline_mode<synchronous>, transform_indices = @transform_6, window_bounds = array<i64: 1, 128>}, {pipeline_mode = #tpu.pipeline_mode<synchronous>, transform_indices = @transform_7, window_bounds = array<i64: 128, 128>}, {pipeline_mode = #tpu.pipeline_mode<synchronous>, transform_indices = @transform_8, window_bounds = array<i64: 1, 128>}, {pipeline_mode = #tpu.pipeline_mode<synchronous>, transform_indices = @transform_9, window_bounds = array<i64: 128, 4>}, {pipeline_mode = #tpu.pipeline_mode<synchronous>, transform_indices = @transform_10, window_bounds = array<i64: 1, 4>}, {transform_indices = @transform_11, window_bounds = array<i64: 16, 4>}]} {
    %c0 = arith.constant 0 : index
    %c0_0 = arith.constant 0 : index
    %0 = vector.load %arg1[%c0, %c0_0] : memref<16x24xf32, #tpu.memory_space<vmem>>, vector<16x24xf32>
    %1 = arith.truncf %0 : vector<16x24xf32> to vector<16x24xbf16>
    %c0_1 = arith.constant 0 : index
    %c0_2 = arith.constant 0 : index
    %2 = vector.load %arg2[%c0_1, %c0_2] : memref<24x128xbf16, #tpu.memory_space<vmem>>, vector<24x128xbf16>
    %cst = arith.constant dense<0.000000e+00> : vector<16x128xf32>
    %3 = tpu.matmul %1, %2, %cst {dimension_numbers = #tpu.dot_dimension_numbers<[1], [0], [0], [1], [0, 0, 1, 1], [], []>} : vector<16x24xbf16>, vector<24x128xbf16>, vector<16x128xf32> -> vector<16x128xf32>
    %c0_3 = arith.constant 0 : index
    %c0_4 = arith.constant 0 : index
    %4 = vector.load %arg3[%c0_3, %c0_4] : memref<1x128xf32, #tpu.memory_space<vmem>>, vector<1x128xf32>
    %5 = vector.broadcast %4 : vector<1x128xf32> to vector<16x128xf32>
    %6 = arith.addf %3, %5 : vector<16x128xf32>
    %cst_5 = arith.constant 0.000000e+00 : f32
    %7 = vector.broadcast %cst_5 : f32 to vector<16x128xf32>
    %8 = arith.maximumf %6, %7 : vector<16x128xf32>
    %9 = arith.truncf %8 : vector<16x128xf32> to vector<16x128xbf16>
    %c0_6 = arith.constant 0 : index
    %c0_7 = arith.constant 0 : index
    %10 = vector.load %arg4[%c0_6, %c0_7] : memref<128x128xbf16, #tpu.memory_space<vmem>>, vector<128x128xbf16>
    %cst_8 = arith.constant dense<0.000000e+00> : vector<16x128xf32>
    %11 = tpu.matmul %9, %10, %cst_8 {dimension_numbers = #tpu.dot_dimension_numbers<[1], [0], [0], [1], [0, 0, 1, 1], [], []>} : vector<16x128xbf16>, vector<128x128xbf16>, vector<16x128xf32> -> vector<16x128xf32>
    %c0_9 = arith.constant 0 : index
    %c0_10 = arith.constant 0 : index
    %12 = vector.load %arg5[%c0_9, %c0_10] : memref<1x128xf32, #tpu.memory_space<vmem>>, vector<1x128xf32>
    %13 = vector.broadcast %12 : vector<1x128xf32> to vector<16x128xf32>
    %14 = arith.addf %11, %13 : vector<16x128xf32>
    %cst_11 = arith.constant 0.000000e+00 : f32
    %15 = vector.broadcast %cst_11 : f32 to vector<16x128xf32>
    %16 = arith.maximumf %14, %15 : vector<16x128xf32>
    %17 = arith.truncf %16 : vector<16x128xf32> to vector<16x128xbf16>
    %c0_12 = arith.constant 0 : index
    %c0_13 = arith.constant 0 : index
    %18 = vector.load %arg6[%c0_12, %c0_13] : memref<128x128xbf16, #tpu.memory_space<vmem>>, vector<128x128xbf16>
    %cst_14 = arith.constant dense<0.000000e+00> : vector<16x128xf32>
    %19 = tpu.matmul %17, %18, %cst_14 {dimension_numbers = #tpu.dot_dimension_numbers<[1], [0], [0], [1], [0, 0, 1, 1], [], []>} : vector<16x128xbf16>, vector<128x128xbf16>, vector<16x128xf32> -> vector<16x128xf32>
    %c0_15 = arith.constant 0 : index
    %c0_16 = arith.constant 0 : index
    %20 = vector.load %arg7[%c0_15, %c0_16] : memref<1x128xf32, #tpu.memory_space<vmem>>, vector<1x128xf32>
    %21 = vector.broadcast %20 : vector<1x128xf32> to vector<16x128xf32>
    %22 = arith.addf %19, %21 : vector<16x128xf32>
    %cst_17 = arith.constant 0.000000e+00 : f32
    %23 = vector.broadcast %cst_17 : f32 to vector<16x128xf32>
    %24 = arith.maximumf %22, %23 : vector<16x128xf32>
    %25 = arith.truncf %24 : vector<16x128xf32> to vector<16x128xbf16>
    %c0_18 = arith.constant 0 : index
    %c0_19 = arith.constant 0 : index
    %26 = vector.load %arg8[%c0_18, %c0_19] : memref<128x128xbf16, #tpu.memory_space<vmem>>, vector<128x128xbf16>
    %cst_20 = arith.constant dense<0.000000e+00> : vector<16x128xf32>
    %27 = tpu.matmul %25, %26, %cst_20 {dimension_numbers = #tpu.dot_dimension_numbers<[1], [0], [0], [1], [0, 0, 1, 1], [], []>} : vector<16x128xbf16>, vector<128x128xbf16>, vector<16x128xf32> -> vector<16x128xf32>
    %c0_21 = arith.constant 0 : index
    %c0_22 = arith.constant 0 : index
    %28 = vector.load %arg9[%c0_21, %c0_22] : memref<1x128xf32, #tpu.memory_space<vmem>>, vector<1x128xf32>
    %29 = vector.broadcast %28 : vector<1x128xf32> to vector<16x128xf32>
    %30 = arith.addf %27, %29 : vector<16x128xf32>
    %cst_23 = arith.constant 0.000000e+00 : f32
    %31 = vector.broadcast %cst_23 : f32 to vector<16x128xf32>
    %32 = arith.maximumf %30, %31 : vector<16x128xf32>
    %33 = arith.truncf %32 : vector<16x128xf32> to vector<16x128xbf16>
    %c0_24 = arith.constant 0 : index
    %c0_25 = arith.constant 0 : index
    %34 = vector.load %arg10[%c0_24, %c0_25] : memref<128x4xbf16, #tpu.memory_space<vmem>>, vector<128x4xbf16>
    %cst_26 = arith.constant dense<0.000000e+00> : vector<16x4xf32>
    %35 = tpu.matmul %33, %34, %cst_26 {dimension_numbers = #tpu.dot_dimension_numbers<[1], [0], [0], [1], [0, 0, 1, 1], [], []>} : vector<16x128xbf16>, vector<128x4xbf16>, vector<16x4xf32> -> vector<16x4xf32>
    %c0_27 = arith.constant 0 : index
    %c0_28 = arith.constant 0 : index
    %36 = vector.load %arg11[%c0_27, %c0_28] : memref<1x4xf32, #tpu.memory_space<vmem>>, vector<1x4xf32>
    %37 = vector.broadcast %36 : vector<1x4xf32> to vector<16x4xf32>
    %38 = arith.addf %35, %37 : vector<16x4xf32>
    %c0_29 = arith.constant 0 : index
    %c0_30 = arith.constant 0 : index
    %39 = vector.load %arg12[%c0_29, %c0_30] : memref<16x4xf32, #tpu.memory_space<vmem>>, vector<16x4xf32>
    tpu.vector_store %arg12[%c0_29, %c0_30], %38 {strides = array<i32>} : memref<16x4xf32, #tpu.memory_space<vmem>>, vector<16x4xf32>,
    return
  }
  func.func @transform_0(%arg0: i32) -> (i32, i32) {
    %c0_i32 = arith.constant 0 : i32
    %c0_i32_0 = arith.constant 0 : i32
    return %arg0, %c0_i32 : i32, i32
  }
  func.func @transform_1(%arg0: i32) -> (i32, i32) {
    %c0_i32 = arith.constant 0 : i32
    %c0_i32_0 = arith.constant 0 : i32
    %c0_i32_1 = arith.constant 0 : i32
    return %c0_i32, %c0_i32_0 : i32, i32
  }
  func.func @transform_2(%arg0: i32) -> (i32, i32) {
    %c0_i32 = arith.constant 0 : i32
    %c0_i32_0 = arith.constant 0 : i32
    %c0_i32_1 = arith.constant 0 : i32
    return %c0_i32, %c0_i32_0 : i32, i32
  }
  func.func @transform_3(%arg0: i32) -> (i32, i32) {
    %c0_i32 = arith.constant 0 : i32
    %c0_i32_0 = arith.constant 0 : i32
    %c0_i32_1 = arith.constant 0 : i32
    return %c0_i32, %c0_i32_0 : i32, i32
  }
  func.func @transform_4(%arg0: i32) -> (i32, i32) {
    %c0_i32 = arith.constant 0 : i32
    %c0_i32_0 = arith.constant 0 : i32
    %c0_i32_1 = arith.constant 0 : i32
    return %c0_i32, %c0_i32_0 : i32, i32
  }
  func.func @transform_5(%arg0: i32) -> (i32, i32) {
    %c0_i32 = arith.constant 0 : i32
    %c0_i32_0 = arith.constant 0 : i32
    %c0_i32_1 = arith.constant 0 : i32
    return %c0_i32, %c0_i32_0 : i32, i32
  }
  func.func @transform_6(%arg0: i32) -> (i32, i32) {
    %c0_i32 = arith.constant 0 : i32
    %c0_i32_0 = arith.constant 0 : i32
    %c0_i32_1 = arith.constant 0 : i32
    return %c0_i32, %c0_i32_0 : i32, i32
  }
  func.func @transform_7(%arg0: i32) -> (i32, i32) {
    %c0_i32 = arith.constant 0 : i32
    %c0_i32_0 = arith.constant 0 : i32
    %c0_i32_1 = arith.constant 0 : i32
    return %c0_i32, %c0_i32_0 : i32, i32
  }
  func.func @transform_8(%arg0: i32) -> (i32, i32) {
    %c0_i32 = arith.constant 0 : i32
    %c0_i32_0 = arith.constant 0 : i32
    %c0_i32_1 = arith.constant 0 : i32
    return %c0_i32, %c0_i32_0 : i32, i32
  }
  func.func @transform_9(%arg0: i32) -> (i32, i32) {
    %c0_i32 = arith.constant 0 : i32
    %c0_i32_0 = arith.constant 0 : i32
    %c0_i32_1 = arith.constant 0 : i32
    return %c0_i32, %c0_i32_0 : i32, i32
  }
  func.func @transform_10(%arg0: i32) -> (i32, i32) {
    %c0_i32 = arith.constant 0 : i32
    %c0_i32_0 = arith.constant 0 : i32
    %c0_i32_1 = arith.constant 0 : i32
    return %c0_i32, %c0_i32_0 : i32, i32
  }
  func.func @transform_11(%arg0: i32) -> (i32, i32) {
    %c0_i32 = arith.constant 0 : i32
    %c0_i32_0 = arith.constant 0 : i32
    return %arg0, %c0_i32 : i32, i32
  }
}

</mosaic_0001>

<llo_original>
// kernel: red_arquitectura_c_forward.1
$region0: #{red_arquitectura_c_forward.1}
  #allocation0 [shape = 'u32[]', space=smem, size = 0x4, offset = 0x4, fixed_abs, tag = 'smem constant byte address 0x4 - core index']
  #allocation1 [shape = 'u32[144,128]{1,0:T(1,128)}', space=vmem, size = 0x12000, scoped, tag = 'internal scratch']
  %s0 = inlined_call_operand.vmem [shape: f32[16,24], index: 0, kind: input, shape index: {}]
  %s1 = inlined_call_operand.vmem [shape: bf16[24,128], index: 1, kind: input, shape index: {}]
  %s2 = inlined_call_operand.vmem [shape: f32[1,128], index: 2, kind: input, shape index: {}]
  %s3 = inlined_call_operand.vmem [shape: bf16[128,128], index: 3, kind: input, shape index: {}]
  %s4 = inlined_call_operand.vmem [shape: f32[1,128], index: 4, kind: input, shape index: {}]
  %s5 = inlined_call_operand.vmem [shape: bf16[128,128], index: 5, kind: input, shape index: {}]
  %s6 = inlined_call_operand.vmem [shape: f32[1,128], index: 6, kind: input, shape index: {}]
  %s7 = inlined_call_operand.vmem [shape: bf16[128,128], index: 7, kind: input, shape index: {}]
  %s8 = inlined_call_operand.vmem [shape: f32[1,128], index: 8, kind: input, shape index: {}]
  %s9 = inlined_call_operand.vmem [shape: bf16[128,4], index: 9, kind: input, shape index: {}]
  %s10 = inlined_call_operand.vmem [shape: f32[1,4], index: 10, kind: input, shape index: {}]
  %s11 = inlined_call_operand.vmem [shape: f32[16,4], index: 11, kind: output, shape index: {}]
  %s12 = sld [smem:[#allocation0]]
  $region54: #{red_arquitectura_c_forward.1} parent=0
    _
  %s14 = ssub.s32 1, %s12
  %s15 = scalar_select 0, %s14, %s12
  // Predicated region
  $region2: #{red_arquitectura_c_forward.1} parent=0 // pred_check
    _
  $region3: #{red_arquitectura_c_forward.1} parent=0 // pred_check_branch
    %17 = sbr.rel (0) target = $region5
  $region4: #{red_arquitectura_c_forward.1} parent=0 // pred_region
    _
  $region5: #{red_arquitectura_c_forward.1} parent=0 // pred_fallthru
    _
  // Predicated region
  $region6: #{red_arquitectura_c_forward.1} parent=0 // pred_check
    _
  $region7: #{red_arquitectura_c_forward.1} parent=0 // pred_check_branch
    %19 = sbr.rel (0) target = $region9
  $region8: #{red_arquitectura_c_forward.1} parent=0 // pred_region
    _
  $region9: #{red_arquitectura_c_forward.1} parent=0 // pred_fallthru
    _
  // Predicated region
  $region10: #{red_arquitectura_c_forward.1} parent=0 // pred_check
    _
  $region11: #{red_arquitectura_c_forward.1} parent=0 // pred_check_branch
    %21 = sbr.rel (0) target = $region13
  $region12: #{red_arquitectura_c_forward.1} parent=0 // pred_region
    _
  $region13: #{red_arquitectura_c_forward.1} parent=0 // pred_fallthru
    _
  // Predicated region
  $region14: #{red_arquitectura_c_forward.1} parent=0 // pred_check
    _
  $region15: #{red_arquitectura_c_forward.1} parent=0 // pred_check_branch
    %23 = sbr.rel (0) target = $region17
  $region16: #{red_arquitectura_c_forward.1} parent=0 // pred_region
    _
  $region17: #{red_arquitectura_c_forward.1} parent=0 // pred_fallthru
    _
  // Predicated region
  $region18: #{red_arquitectura_c_forward.1} parent=0 // pred_check
    _
  $region19: #{red_arquitectura_c_forward.1} parent=0 // pred_check_branch
    %25 = sbr.rel (0) target = $region21
  $region20: #{red_arquitectura_c_forward.1} parent=0 // pred_region
    _
  $region21: #{red_arquitectura_c_forward.1} parent=0 // pred_fallthru
    _
  // Predicated region
  $region22: #{red_arquitectura_c_forward.1} parent=0 // pred_check
    _
  $region23: #{red_arquitectura_c_forward.1} parent=0 // pred_check_branch
    %27 = sbr.rel (0) target = $region25
  $region24: #{red_arquitectura_c_forward.1} parent=0 // pred_region
    _
  $region25: #{red_arquitectura_c_forward.1} parent=0 // pred_fallthru
    _
  // Predicated region
  $region26: #{red_arquitectura_c_forward.1} parent=0 // pred_check
    _
  $region27: #{red_arquitectura_c_forward.1} parent=0 // pred_check_branch
    %29 = sbr.rel (0) target = $region29
  $region28: #{red_arquitectura_c_forward.1} parent=0 // pred_region
    _
  $region29: #{red_arquitectura_c_forward.1} parent=0 // pred_fallthru
    _
  // Predicated region
  $region30: #{red_arquitectura_c_forward.1} parent=0 // pred_check
    _
  $region31: #{red_arquitectura_c_forward.1} parent=0 // pred_check_branch
    %31 = sbr.rel (0) target = $region33
  $region32: #{red_arquitectura_c_forward.1} parent=0 // pred_region
    _
  $region33: #{red_arquitectura_c_forward.1} parent=0 // pred_fallthru
    _
  // Predicated region
  $region34: #{red_arquitectura_c_forward.1} parent=0 // pred_check
    _
  $region35: #{red_arquitectura_c_forward.1} parent=0 // pred_check_branch
    %33 = sbr.rel (0) target = $region37
  $region36: #{red_arquitectura_c_forward.1} parent=0 // pred_region
    _
  $region37: #{red_arquitectura_c_forward.1} parent=0 // pred_fallthru
    _
  // Predicated region
  $region38: #{red_arquitectura_c_forward.1} parent=0 // pred_check
    _
  $region39: #{red_arquitectura_c_forward.1} parent=0 // pred_check_branch
    %35 = sbr.rel (0) target = $region41
  $region40: #{red_arquitectura_c_forward.1} parent=0 // pred_region
    _
  $region41: #{red_arquitectura_c_forward.1} parent=0 // pred_fallthru
    _
  // Predicated region
  $region42: #{red_arquitectura_c_forward.1} parent=0 // pred_check
    _
  $region43: #{red_arquitectura_c_forward.1} parent=0 // pred_check_branch
    %37 = sbr.rel (0) target = $region45
  $region44: #{red_arquitectura_c_forward.1} parent=0 // pred_region
    _
  $region45: #{red_arquitectura_c_forward.1} parent=0 // pred_fallthru
    _
  %v39 = vld [vmem:[%s0] sm:$0xff]
  %v40 = vld [vmem:[%s0 + $0x8] sm:$0xff]
  %v41 = vpack.c.bf16 %v40, %v39
  %v42 = vld [vmem:[%s1] sm:$0xf]
  %v43 = vld [vmem:[%s1 + $0x4] sm:$0xf]
  %v44 = vld [vmem:[%s1 + $0x8] sm:$0xf]
  %v45 = vld [vmem:[%s2] sm:$0x1]
  %v47 = vlaneseq
  %v48 = vshrl.u32 %v47, 7
  %v49 = vsub.s32 0, %v48
  %v50 = vrot.slane %v45, %v49
  %v55 = vunpack.c.l.b16 %v42
  %v56 = vunpack.c.l.b16 %v43
  %v57 = vunpack.c.l.b16 %v44
  %v58 = vpack.c.b16 %v56, %v55
  %v59 = vpack.c.b16 %v57, %v57
  %vm61 = vcmask 195584
  %v63 = vsel %vm61, %v41, 0
  %vm65 = vcmask 1043456
  %v67 = vsel %vm65, %v59, 0
  %69 = vmatprep.subr.bf16.mxu0 0
  %70 = vmatpush1.bf16.msra.mxu0 %v58
  %71 = vmatprep.subr.bf16.mxu0 0
  %72 = vmatpush1.bf16.msra.mxu0 %v67
  %73 = vmatprep.subr.bf16.mxu0 0
  %74 = vmatpush1.bf16.msra.mxu0 0
  %75 = vmatprep.subr.bf16.mxu0 0
  %76 = vmatpush1.bf16.msra.mxu0 0
  %77 = vmatprep.subr.bf16.mxu0 0
  %78 = vmatpush1.bf16.msra.mxu0 0
  %79 = vmatprep.subr.bf16.mxu0 0
  %80 = vmatpush1.bf16.msra.mxu0 0
  %81 = vmatprep.subr.bf16.mxu0 0
  %82 = vmatpush1.bf16.msra.mxu0 0
  %83 = vmatprep.subr.bf16.mxu0 0
  %84 = vmatpush1.bf16.msra.mxu0 0
  %85 = vmatprep.subr.bf16.mxu0 0
  %86 = vmatpush1.bf16.msra.mxu0 0
  %87 = vmatprep.subr.bf16.mxu0 0
  %88 = vmatpush1.bf16.msra.mxu0 0
  %89 = vmatprep.subr.bf16.mxu0 0
  %90 = vmatpush1.bf16.msra.mxu0 0
  %91 = vmatprep.subr.bf16.mxu0 0
  %92 = vmatpush1.bf16.msra.mxu0 0
  %93 = vmatprep.subr.bf16.mxu0 0
  %94 = vmatpush1.bf16.msra.mxu0 0
  %95 = vmatprep.subr.bf16.mxu0 0
  %96 = vmatpush1.bf16.msra.mxu0 0
  %97 = vmatprep.subr.bf16.mxu0 0
  %98 = vmatpush1.bf16.msra.mxu0 0
  %99 = vmatprep.subr.bf16.mxu0 0
  %100 = vmatpush1.bf16.msra.mxu0 0
  %101 = vmatprep.mubr.bf16.mxu0 0
  %102 = vmatmul.mubr.bf16.gmra.mrb[0].mxu0 %v63
  %v103 = vpop.f32.mrb[0].mxu0
  %v104 = vadd.f32 %v50, %v103
  %v105 = vpop.f32.mrb[0].mxu0
  %v106 = vpop.f32.mrb[0].mxu0
  %v107 = vadd.f32 %v50, %v106
  %v108 = vpop.f32.mrb[0].mxu0
  %109 = vdwg.mxu0
  %v110 = vmax.f32 %v104, 0.0
  %v111 = vmax.f32 %v107, 0.0
  %v112 = vpack.c.bf16 %v111, %v110
  %v113 = vld [vmem:[%s3] sm:$0xf]
  %v114 = vld [vmem:[%s3 + $0x4] sm:$0xf]
  %v115 = vld [vmem:[%s3 + $0x8] sm:$0xf]
  %v116 = vld [vmem:[%s3 + $0xc] sm:$0xf]
  %v117 = vld [vmem:[%s3 + $0x10] sm:$0xf]
  %v118 = vld [vmem:[%s3 + $0x14] sm:$0xf]
  %v119 = vld [vmem:[%s3 + $0x18] sm:$0xf]
  %v120 = vld [vmem:[%s3 + $0x1c] sm:$0xf]
  %v121 = vld [vmem:[%s3 + $0x20] sm:$0xf]
  %v122 = vld [vmem:[%s3 + $0x24] sm:$0xf]
  %v123 = vld [vmem:[%s3 + $0x28] sm:$0xf]
  %v124 = vld [vmem:[%s3 + $0x2c] sm:$0xf]
  %v125 = vld [vmem:[%s3 + $0x30] sm:$0xf]
  %v126 = vld [vmem:[%s3 + $0x34] sm:$0xf]
  %v127 = vld [vmem:[%s3 + $0x38] sm:$0xf]
  %v128 = vld [vmem:[%s3 + $0x3c] sm:$0xf]
  %v129 = vld [vmem:[%s4] sm:$0x1]
  %v131 = vlaneseq
  %v132 = vshrl.u32 %v131, 7
  %v133 = vsub.s32 0, %v132
  %v134 = vrot.slane %v129, %v133
  %v152 = vunpack.c.l.b16 %v113
  %v153 = vunpack.c.l.b16 %v114
  %v154 = vunpack.c.l.b16 %v115
  %v155 = vunpack.c.l.b16 %v116
  %v156 = vunpack.c.l.b16 %v117
  %v157 = vunpack.c.l.b16 %v118
  %v158 = vunpack.c.l.b16 %v119
  %v159 = vunpack.c.l.b16 %v120
  %v160 = vunpack.c.l.b16 %v121
  %v161 = vunpack.c.l.b16 %v122
  %v162 = vunpack.c.l.b16 %v123
  %v163 = vunpack.c.l.b16 %v124
  %v164 = vunpack.c.l.b16 %v125
  %v165 = vunpack.c.l.b16 %v126
  %v166 = vunpack.c.l.b16 %v127
  %v167 = vunpack.c.l.b16 %v128
  %v168 = vpack.c.b16 %v153, %v152
  %v169 = vpack.c.b16 %v155, %v154
  %v170 = vpack.c.b16 %v157, %v156
  %v171 = vpack.c.b16 %v159, %v158
  %v172 = vpack.c.b16 %v161, %v160
  %v173 = vpack.c.b16 %v163, %v162
  %v174 = vpack.c.b16 %v165, %v164
  %v175 = vpack.c.b16 %v167, %v166
  %184 = vmatprep.subr.bf16.mxu0 0
  %185 = vmatpush1.bf16.msra.mxu0 %v168
  %186 = vmatprep.subr.bf16.mxu0 0
  %187 = vmatpush1.bf16.msra.mxu0 %v169
  %188 = vmatprep.subr.bf16.mxu0 0
  %189 = vmatpush1.bf16.msra.mxu0 %v170
  %190 = vmatprep.subr.bf16.mxu0 0
  %191 = vmatpush1.bf16.msra.mxu0 %v171
  %192 = vmatprep.subr.bf16.mxu0 0
  %193 = vmatpush1.bf16.msra.mxu0 %v172
  %194 = vmatprep.subr.bf16.mxu0 0
  %195 = vmatpush1.bf16.msra.mxu0 %v173
  %196 = vmatprep.subr.bf16.mxu0 0
  %197 = vmatpush1.bf16.msra.mxu0 %v174
  %198 = vmatprep.subr.bf16.mxu0 0
  %199 = vmatpush1.bf16.msra.mxu0 %v175
  %200 = vmatprep.subr.bf16.mxu0 0
  %201 = vmatpush1.bf16.msra.mxu0 0
  %202 = vmatprep.subr.bf16.mxu0 0
  %203 = vmatpush1.bf16.msra.mxu0 0
  %204 = vmatprep.subr.bf16.mxu0 0
  %205 = vmatpush1.bf16.msra.mxu0 0
  %206 = vmatprep.subr.bf16.mxu0 0
  %207 = vmatpush1.bf16.msra.mxu0 0
  %208 = vmatprep.subr.bf16.mxu0 0
  %209 = vmatpush1.bf16.msra.mxu0 0
  %210 = vmatprep.subr.bf16.mxu0 0
  %211 = vmatpush1.bf16.msra.mxu0 0
  %212 = vmatprep.subr.bf16.mxu0 0
  %213 = vmatpush1.bf16.msra.mxu0 0
  %214 = vmatprep.subr.bf16.mxu0 0
  %215 = vmatpush1.bf16.msra.mxu0 0
  %216 = vmatprep.mubr.bf16.mxu0 0
  %217 = vmatmul.mubr.bf16.gmra.mrb[0].mxu0 %v112
  %v218 = vpop.f32.mrb[0].mxu0
  %v219 = vadd.f32 %v134, %v218
  %v220 = vpop.f32.mrb[0].mxu0
  %v221 = vpop.f32.mrb[0].mxu0
  %v222 = vadd.f32 %v134, %v221
  %v223 = vpop.f32.mrb[0].mxu0
  %224 = vdwg.mxu0
  %v225 = vmax.f32 %v219, 0.0
  %v226 = vmax.f32 %v222, 0.0
  %v227 = vpack.c.bf16 %v226, %v225
  %v228 = vld [vmem:[%s5] sm:$0xf]
  %v229 = vld [vmem:[%s5 + $0x4] sm:$0xf]
  %v230 = vld [vmem:[%s5 + $0x8] sm:$0xf]
  %v231 = vld [vmem:[%s5 + $0xc] sm:$0xf]
  %v232 = vld [vmem:[%s5 + $0x10] sm:$0xf]
  %v233 = vld [vmem:[%s5 + $0x14] sm:$0xf]
  %v234 = vld [vmem:[%s5 + $0x18] sm:$0xf]
  %v235 = vld [vmem:[%s5 + $0x1c] sm:$0xf]
  %v236 = vld [vmem:[%s5 + $0x20] sm:$0xf]
  %v237 = vld [vmem:[%s5 + $0x24] sm:$0xf]
  %v238 = vld [vmem:[%s5 + $0x28] sm:$0xf]
  %v239 = vld [vmem:[%s5 + $0x2c] sm:$0xf]
  %v240 = vld [vmem:[%s5 + $0x30] sm:$0xf]
  %v241 = vld [vmem:[%s5 + $0x34] sm:$0xf]
  %v242 = vld [vmem:[%s5 + $0x38] sm:$0xf]
  %v243 = vld [vmem:[%s5 + $0x3c] sm:$0xf]
  %v244 = vld [vmem:[%s6] sm:$0x1]
  %v246 = vlaneseq
  %v247 = vshrl.u32 %v246, 7
  %v248 = vsub.s32 0, %v247
  %v249 = vrot.slane %v244, %v248
  %v267 = vunpack.c.l.b16 %v228
  %v268 = vunpack.c.l.b16 %v229
  %v269 = vunpack.c.l.b16 %v230
  %v270 = vunpack.c.l.b16 %v231
  %v271 = vunpack.c.l.b16 %v232
  %v272 = vunpack.c.l.b16 %v233
  %v273 = vunpack.c.l.b16 %v234
  %v274 = vunpack.c.l.b16 %v235
  %v275 = vunpack.c.l.b16 %v236
  %v276 = vunpack.c.l.b16 %v237
  %v277 = vunpack.c.l.b16 %v238
  %v278 = vunpack.c.l.b16 %v239
  %v279 = vunpack.c.l.b16 %v240
  %v280 = vunpack.c.l.b16 %v241
  %v281 = vunpack.c.l.b16 %v242
  %v282 = vunpack.c.l.b16 %v243
  %v283 = vpack.c.b16 %v268, %v267
  %v284 = vpack.c.b16 %v270, %v269
  %v285 = vpack.c.b16 %v272, %v271
  %v286 = vpack.c.b16 %v274, %v273
  %v287 = vpack.c.b16 %v276, %v275
  %v288 = vpack.c.b16 %v278, %v277
  %v289 = vpack.c.b16 %v280, %v279
  %v290 = vpack.c.b16 %v282, %v281
  %299 = vmatprep.subr.bf16.mxu0 0
  %300 = vmatpush1.bf16.msra.mxu0 %v283
  %301 = vmatprep.subr.bf16.mxu0 0
  %302 = vmatpush1.bf16.msra.mxu0 %v284
  %303 = vmatprep.subr.bf16.mxu0 0
  %304 = vmatpush1.bf16.msra.mxu0 %v285
  %305 = vmatprep.subr.bf16.mxu0 0
  %306 = vmatpush1.bf16.msra.mxu0 %v286
  %307 = vmatprep.subr.bf16.mxu0 0
  %308 = vmatpush1.bf16.msra.mxu0 %v287
  %309 = vmatprep.subr.bf16.mxu0 0
  %310 = vmatpush1.bf16.msra.mxu0 %v288
  %311 = vmatprep.subr.bf16.mxu0 0
  %312 = vmatpush1.bf16.msra.mxu0 %v289
  %313 = vmatprep.subr.bf16.mxu0 0
  %314 = vmatpush1.bf16.msra.mxu0 %v290
  %315 = vmatprep.subr.bf16.mxu0 0
  %316 = vmatpush1.bf16.msra.mxu0 0
  %317 = vmatprep.subr.bf16.mxu0 0
  %318 = vmatpush1.bf16.msra.mxu0 0
  %319 = vmatprep.subr.bf16.mxu0 0
  %320 = vmatpush1.bf16.msra.mxu0 0
  %321 = vmatprep.subr.bf16.mxu0 0
  %322 = vmatpush1.bf16.msra.mxu0 0
  %323 = vmatprep.subr.bf16.mxu0 0
  %324 = vmatpush1.bf16.msra.mxu0 0
  %325 = vmatprep.subr.bf16.mxu0 0
  %326 = vmatpush1.bf16.msra.mxu0 0
  %327 = vmatprep.subr.bf16.mxu0 0
  %328 = vmatpush1.bf16.msra.mxu0 0
  %329 = vmatprep.subr.bf16.mxu0 0
  %330 = vmatpush1.bf16.msra.mxu0 0
  %331 = vmatprep.mubr.bf16.mxu0 0
  %332 = vmatmul.mubr.bf16.gmra.mrb[0].mxu0 %v227
  %v333 = vpop.f32.mrb[0].mxu0
  %v334 = vadd.f32 %v249, %v333
  %v335 = vpop.f32.mrb[0].mxu0
  %v336 = vpop.f32.mrb[0].mxu0
  %v337 = vadd.f32 %v249, %v336
  %v338 = vpop.f32.mrb[0].mxu0
  %339 = vdwg.mxu0
  %v340 = vmax.f32 %v334, 0.0
  %v341 = vmax.f32 %v337, 0.0
  %v342 = vpack.c.bf16 %v341, %v340
  %v343 = vld [vmem:[%s7] sm:$0xf]
  %v344 = vld [vmem:[%s7 + $0x4] sm:$0xf]
  %v345 = vld [vmem:[%s7 + $0x8] sm:$0xf]
  %v346 = vld [vmem:[%s7 + $0xc] sm:$0xf]
  %v347 = vld [vmem:[%s7 + $0x10] sm:$0xf]
  %v348 = vld [vmem:[%s7 + $0x14] sm:$0xf]
  %v349 = vld [vmem:[%s7 + $0x18] sm:$0xf]
  %v350 = vld [vmem:[%s7 + $0x1c] sm:$0xf]
  %v351 = vld [vmem:[%s7 + $0x20] sm:$0xf]
  %v352 = vld [vmem:[%s7 + $0x24] sm:$0xf]
  %v353 = vld [vmem:[%s7 + $0x28] sm:$0xf]
  %v354 = vld [vmem:[%s7 + $0x2c] sm:$0xf]
  %v355 = vld [vmem:[%s7 + $0x30] sm:$0xf]
  %v356 = vld [vmem:[%s7 + $0x34] sm:$0xf]
  %v357 = vld [vmem:[%s7 + $0x38] sm:$0xf]
  %v358 = vld [vmem:[%s7 + $0x3c] sm:$0xf]
  %v359 = vld [vmem:[%s8] sm:$0x1]
  %v361 = vlaneseq
  %v362 = vshrl.u32 %v361, 7
  %v363 = vsub.s32 0, %v362
  %v364 = vrot.slane %v359, %v363
  %v382 = vunpack.c.l.b16 %v343
  %v383 = vunpack.c.l.b16 %v344
  %v384 = vunpack.c.l.b16 %v345
  %v385 = vunpack.c.l.b16 %v346
  %v386 = vunpack.c.l.b16 %v347
  %v387 = vunpack.c.l.b16 %v348
  %v388 = vunpack.c.l.b16 %v349
  %v389 = vunpack.c.l.b16 %v350
  %v390 = vunpack.c.l.b16 %v351
  %v391 = vunpack.c.l.b16 %v352
  %v392 = vunpack.c.l.b16 %v353
  %v393 = vunpack.c.l.b16 %v354
  %v394 = vunpack.c.l.b16 %v355
  %v395 = vunpack.c.l.b16 %v356
  %v396 = vunpack.c.l.b16 %v357
  %v397 = vunpack.c.l.b16 %v358
  %v398 = vpack.c.b16 %v383, %v382
  %v399 = vpack.c.b16 %v385, %v384
  %v400 = vpack.c.b16 %v387, %v386
  %v401 = vpack.c.b16 %v389, %v388
  %v402 = vpack.c.b16 %v391, %v390
  %v403 = vpack.c.b16 %v393, %v392
  %v404 = vpack.c.b16 %v395, %v394
  %v405 = vpack.c.b16 %v397, %v396
  %414 = vmatprep.subr.bf16.mxu0 0
  %415 = vmatpush1.bf16.msra.mxu0 %v398
  %416 = vmatprep.subr.bf16.mxu0 0
  %417 = vmatpush1.bf16.msra.mxu0 %v399
  %418 = vmatprep.subr.bf16.mxu0 0
  %419 = vmatpush1.bf16.msra.mxu0 %v400
  %420 = vmatprep.subr.bf16.mxu0 0
  %421 = vmatpush1.bf16.msra.mxu0 %v401
  %422 = vmatprep.subr.bf16.mxu0 0
  %423 = vmatpush1.bf16.msra.mxu0 %v402
  %424 = vmatprep.subr.bf16.mxu0 0
  %425 = vmatpush1.bf16.msra.mxu0 %v403
  %426 = vmatprep.subr.bf16.mxu0 0
  %427 = vmatpush1.bf16.msra.mxu0 %v404
  %428 = vmatprep.subr.bf16.mxu0 0
  %429 = vmatpush1.bf16.msra.mxu0 %v405
  %430 = vmatprep.subr.bf16.mxu0 0
  %431 = vmatpush1.bf16.msra.mxu0 0
  %432 = vmatprep.subr.bf16.mxu0 0
  %433 = vmatpush1.bf16.msra.mxu0 0
  %434 = vmatprep.subr.bf16.mxu0 0
  %435 = vmatpush1.bf16.msra.mxu0 0
  %436 = vmatprep.subr.bf16.mxu0 0
  %437 = vmatpush1.bf16.msra.mxu0 0
  %438 = vmatprep.subr.bf16.mxu0 0
  %439 = vmatpush1.bf16.msra.mxu0 0
  %440 = vmatprep.subr.bf16.mxu0 0
  %441 = vmatpush1.bf16.msra.mxu0 0
  %442 = vmatprep.subr.bf16.mxu0 0
  %443 = vmatpush1.bf16.msra.mxu0 0
  %444 = vmatprep.subr.bf16.mxu0 0
  %445 = vmatpush1.bf16.msra.mxu0 0
  %446 = vmatprep.mubr.bf16.mxu0 0
  %447 = vmatmul.mubr.bf16.gmra.mrb[0].mxu0 %v342
  %v448 = vpop.f32.mrb[0].mxu0
  %v449 = vadd.f32 %v364, %v448
  %v450 = vpop.f32.mrb[0].mxu0
  %v451 = vpop.f32.mrb[0].mxu0
  %v452 = vadd.f32 %v364, %v451
  %v453 = vpop.f32.mrb[0].mxu0
  %454 = vdwg.mxu0
  %v455 = vmax.f32 %v449, 0.0
  %v456 = vmax.f32 %v452, 0.0
  %v457 = vpack.c.bf16 %v456, %v455
  %v458 = vld [vmem:[%s9] sm:$0xf]
  %v459 = vld [vmem:[%s9 + $0x4] sm:$0xf]
  %v460 = vld [vmem:[%s9 + $0x8] sm:$0xf]
  %v461 = vld [vmem:[%s9 + $0xc] sm:$0xf]
  %v462 = vld [vmem:[%s9 + $0x10] sm:$0xf]
  %v463 = vld [vmem:[%s9 + $0x14] sm:$0xf]
  %v464 = vld [vmem:[%s9 + $0x18] sm:$0xf]
  %v465 = vld [vmem:[%s9 + $0x1c] sm:$0xf]
  %v466 = vld [vmem:[%s9 + $0x20] sm:$0xf]
  %v467 = vld [vmem:[%s9 + $0x24] sm:$0xf]
  %v468 = vld [vmem:[%s9 + $0x28] sm:$0xf]
  %v469 = vld [vmem:[%s9 + $0x2c] sm:$0xf]
  %v470 = vld [vmem:[%s9 + $0x30] sm:$0xf]
  %v471 = vld [vmem:[%s9 + $0x34] sm:$0xf]
  %v472 = vld [vmem:[%s9 + $0x38] sm:$0xf]
  %v473 = vld [vmem:[%s9 + $0x3c] sm:$0xf]
  %v474 = vld [vmem:[%s10] sm:$0x1]
  %v476 = vlaneseq
  %v477 = vshrl.u32 %v476, 7
  %v478 = vsub.s32 0, %v477
  %v479 = vrot.slane %v474, %v478
  %v497 = vunpack.c.l.b16 %v458
  %v498 = vunpack.c.l.b16 %v459
  %v499 = vunpack.c.l.b16 %v460
  %v500 = vunpack.c.l.b16 %v461
  %v501 = vunpack.c.l.b16 %v462
  %v502 = vunpack.c.l.b16 %v463
  %v503 = vunpack.c.l.b16 %v464
  %v504 = vunpack.c.l.b16 %v465
  %v505 = vunpack.c.l.b16 %v466
  %v506 = vunpack.c.l.b16 %v467
  %v507 = vunpack.c.l.b16 %v468
  %v508 = vunpack.c.l.b16 %v469
  %v509 = vunpack.c.l.b16 %v470
  %v510 = vunpack.c.l.b16 %v471
  %v511 = vunpack.c.l.b16 %v472
  %v512 = vunpack.c.l.b16 %v473
  %v513 = vpack.c.b16 %v498, %v497
  %v514 = vpack.c.b16 %v500, %v499
  %v515 = vpack.c.b16 %v502, %v501
  %v516 = vpack.c.b16 %v504, %v503
  %v517 = vpack.c.b16 %v506, %v505
  %v518 = vpack.c.b16 %v508, %v507
  %v519 = vpack.c.b16 %v510, %v509
  %v520 = vpack.c.b16 %v512, %v511
  %529 = vmatprep.subr.bf16.mxu0 0
  %530 = vmatpush1.bf16.msra.mxu0 %v513
  %531 = vmatprep.subr.bf16.mxu0 0
  %532 = vmatpush1.bf16.msra.mxu0 %v514
  %533 = vmatprep.subr.bf16.mxu0 0
  %534 = vmatpush1.bf16.msra.mxu0 %v515
  %535 = vmatprep.subr.bf16.mxu0 0
  %536 = vmatpush1.bf16.msra.mxu0 %v516
  %537 = vmatprep.subr.bf16.mxu0 0
  %538 = vmatpush1.bf16.msra.mxu0 %v517
  %539 = vmatprep.subr.bf16.mxu0 0
  %540 = vmatpush1.bf16.msra.mxu0 %v518
  %541 = vmatprep.subr.bf16.mxu0 0
  %542 = vmatpush1.bf16.msra.mxu0 %v519
  %543 = vmatprep.subr.bf16.mxu0 0
  %544 = vmatpush1.bf16.msra.mxu0 %v520
  %545 = vmatprep.subr.bf16.mxu0 0
  %546 = vmatpush1.bf16.msra.mxu0 0
  %547 = vmatprep.subr.bf16.mxu0 0
  %548 = vmatpush1.bf16.msra.mxu0 0
  %549 = vmatprep.subr.bf16.mxu0 0
  %550 = vmatpush1.bf16.msra.mxu0 0
  %551 = vmatprep.subr.bf16.mxu0 0
  %552 = vmatpush1.bf16.msra.mxu0 0
  %553 = vmatprep.subr.bf16.mxu0 0
  %554 = vmatpush1.bf16.msra.mxu0 0
  %555 = vmatprep.subr.bf16.mxu0 0
  %556 = vmatpush1.bf16.msra.mxu0 0
  %557 = vmatprep.subr.bf16.mxu0 0
  %558 = vmatpush1.bf16.msra.mxu0 0
  %559 = vmatprep.subr.bf16.mxu0 0
  %560 = vmatpush1.bf16.msra.mxu0 0
  %561 = vmatprep.mubr.bf16.mxu0 0
  %562 = vmatmul.mubr.bf16.gmra.mrb[0].mxu0 %v457
  %v563 = vpop.f32.mrb[0].mxu0
  %v564 = vadd.f32 %v479, %v563
  %v565 = vpop.f32.mrb[0].mxu0
  %v566 = vpop.f32.mrb[0].mxu0
  %v567 = vadd.f32 %v479, %v566
  %v568 = vpop.f32.mrb[0].mxu0
  %569 = vdwg.mxu0
  %vm570 = vcmask 31744
  %571 = vst.msk [vmem:[%s11] sm:$0xff] %vm570, %v564
  %572 = vst.msk [vmem:[%s11 + $0x8] sm:$0xff] %vm570, %v567
  // Predicated region
  $region46: #{red_arquitectura_c_forward.1} parent=0 // pred_check
    _
  $region47: #{red_arquitectura_c_forward.1} parent=0 // pred_check_branch
    %574 = sbr.rel (0) target = $region49
  $region48: #{red_arquitectura_c_forward.1} parent=0 // pred_region
    _
  $region49: #{red_arquitectura_c_forward.1} parent=0 // pred_fallthru
    _
  // Predicated region
  $region50: #{red_arquitectura_c_forward.1} parent=0 // pred_check
    _
  $region51: #{red_arquitectura_c_forward.1} parent=0 // pred_check_branch
    %576 = sbr.rel (0) target = $region53
  $region52: #{red_arquitectura_c_forward.1} parent=0 // pred_region
    _
  $region53: #{red_arquitectura_c_forward.1} parent=0 // pred_fallthru
    _

</llo_original>
